<compile_context>
chip_gen: v6e
topology: v6e:2x2x1
jax: 0.10.0
libtpu: 0.0.40
codegen_flags: <defaults>
</compile_context>

<pallas_src>
import jax
import jax.numpy as jnp
from jax.experimental import pallas as pl
from jax.experimental.pallas import tpu as pltpu

# TODO(synk): BertModel.from_pretrained('bert-base-uncased') (the encoder) has
# no clean in-kernel equivalent without checkpoint weights; the kernel consumes
# the encoder's last_hidden_state directly.  (SupConModel also defines
# self.norm = BatchNorm1d(feat_dim) but never uses it in forward.)


def _supcon_head_kernel(cls_ref, w_ref, b_ref, out_ref):
    """out = F.normalize(cls @ W + b, dim=1) for one batch tile.

    cls_ref: [tb, H]  bf16   w_ref: [H, TP] bf16   b_ref: [1, TP] f32
    out_ref: [tb, TP] f32 (lane-dense; padded cols are exact zeros)
    """
    logits = jnp.dot(cls_ref[...], w_ref[...],
                     preferred_element_type=jnp.float32) + b_ref[...]   # MXU, f32 acc
    # Padded columns of W/b are exact zeros -> padded logits are zero -> the
    # row norm over TP columns equals the norm over the true T columns.
    sq = jnp.sum(logits * logits, axis=1, keepdims=True)                # [tb, 1]
    inv = jax.lax.rsqrt(jnp.maximum(sq, 1e-24))   # == 1 / max(||x||_2, 1e-12)
    out_ref[...] = (logits * inv).astype(out_ref.dtype)


def prepare_fc_params(fc_w, fc_b, param_dtype=jnp.bfloat16):
    """Pad + cast fc params ONCE at init (hoisted out of the per-call forward).

    fc_w: [H, T] (pre-transposed nn.Linear weight), fc_b: [T].
    Returns (w_p [H, TP] bf16, b_p [1, TP] f32, T) with TP a multiple of 128.
    """
    H, T = fc_w.shape
    TP = ((T + 127) // 128) * 128
    w_p = jnp.zeros((H, TP), param_dtype).at[:, :T].set(fc_w.astype(param_dtype))
    b_p = jnp.zeros((1, TP), jnp.float32).at[0, :T].set(fc_b.astype(jnp.float32))
    return w_p, b_p, T


def _num_tensorcores_per_chip():
    """v7x has 2 TensorCores per chip (shard the grid); v5e/v6e have 1."""
    try:
        kind = jax.devices()[0].device_kind.lower()
    except Exception:
        return 1
    return 2 if "v7" in kind else 1


def _pick_block_b(B, H, TP, num_tc):
    """Largest sublane-aligned batch tile under a conservative VMEM budget.

    Single-TC chips (v5e/v6e): one maximal block — extra grid steps are pure
    per-step overhead because the weights are resident.  v7x: aim for >= num_tc
    grid steps so the "parallel" axis shards across both TensorCores.
    The 8 MiB budget (bf16 input + f32 padded output, x2 double-buffering)
    stays far inside v5e's 16 MiB scoped-VMEM default and v7x's 64 MiB VMEM.
    """
    budget = 8 * 1024 * 1024
    per_row = 2 * (H * 2 + TP * 4)            # double-buffered bytes per batch row
    cap = max(8, (budget // per_row) // 8 * 8)
    want = pl.cdiv(B, max(num_tc, 1))
    want = ((want + 7) // 8) * 8              # sublane-aligned
    return int(min(cap, max(8, want)))


def supcon_forward(last_hidden_state, fc_params, *, block_b=None,
                   return_padded=False):
    """last_hidden_state: [B, S, H] (encoder output); fc_params from prepare_fc_params.

    Returns F.normalize(fc(dropout(CLS)), dim=1) -> [B, T] (or [B, TP] padded).
    """
    w_p, b_p, T = fc_params
    B, S, H = last_hidden_state.shape
    Hw, TP = w_p.shape
    assert Hw == H

    # CLS extraction + bf16 cast in the wrapper: the kernel gets a clean 2-D
    # (8,128)-tiled input (no sublane-1 block, no in-kernel relayout) and HBM
    # traffic for the dominant input is halved.  Dropout is identity at eval.
    cls = last_hidden_state[:, 0, :].astype(w_p.dtype)                  # [B, H]

    if block_b is None:
        block_b = _pick_block_b(B, H, TP, _num_tensorcores_per_chip())
    grid = (pl.cdiv(B, block_b),)

    out_padded = pl.pallas_call(
        _supcon_head_kernel,
        out_shape=jax.ShapeDtypeStruct((B, TP), jnp.float32),
        grid_spec=pltpu.PrefetchScalarGridSpec(
            num_scalar_prefetch=0,
            grid=grid,
            in_specs=[
                # Batch tile of CLS rows (2-D, contiguous, (8,128)-clean).
                pl.BlockSpec((block_b, H), lambda i: (i, 0)),
                # Weights / bias VMEM-resident across all grid steps.
                pl.BlockSpec((H, TP), lambda i: (0, 0)),
                pl.BlockSpec((1, TP), lambda i: (0, 0)),
            ],
            out_specs=pl.BlockSpec((block_b, TP), lambda i: (i, 0)),
        ),
        compiler_params=pltpu.CompilerParams(
            dimension_semantics=("parallel",)),   # batch shards across v7x's 2 TCs
    )(cls, w_p, b_p)

    if return_padded:
        # Zero columns leave pairwise dot products (SupCon loss) unchanged.
        return out_padded
    return out_padded[:, :T]


if __name__ == "__main__":
    # Small shapes consistent with the module's forward:
    #   batch=8, seq=8, feat_dim (encoder hidden size)=64, target_size=16
    B, S, FEAT, TGT = 8, 8, 64, 16

    key = jax.random.PRNGKey(0)
    k_h, k_w, k_b = jax.random.split(key, 3)

    # Synthetic encoder output (stands in for BERT last_hidden_state).
    hidden = jax.random.normal(k_h, (B, S, FEAT), dtype=jnp.float32)

    # Deterministic nn.Linear(feat_dim, target_size) init: U(-1/sqrt(fan_in), +).
    bound = 1.0 / jnp.sqrt(jnp.float32(FEAT))
    fc_w = jax.random.uniform(k_w, (FEAT, TGT), jnp.float32, -bound, bound)
    fc_b = jax.random.uniform(k_b, (TGT,), jnp.float32, -bound, bound)

    # Pad/cast fc params once (init-time), reuse every forward call.
    fc_params = prepare_fc_params(fc_w, fc_b)
    w_p, b_p, _ = fc_params

    out = supcon_forward(hidden, fc_params)
    out = jax.block_until_ready(out)
    assert out.shape == (B, TGT)

    # (1) Tight check against a precision-matched reference (same bf16 params /
    #     bf16 CLS, f32 accumulate + f32 normalize) -> verifies the kernel math.
    ref_cls = hidden[:, 0, :].astype(jnp.bfloat16)
    ref_logits = jnp.dot(ref_cls, w_p, preferred_element_type=jnp.float32) + b_p
    ref_sq = jnp.sum(ref_logits * ref_logits, axis=1, keepdims=True)
    ref_matched = (ref_logits * jax.lax.rsqrt(jnp.maximum(ref_sq, 1e-24)))[:, :TGT]
    assert jnp.allclose(out, ref_matched, atol=1e-5, rtol=1e-5)

    # (2) Semantic check against the full-f32 module formula (F.normalize of the
    #     f32 linear head); tolerance reflects bf16 parameter/activation storage.
    cls32 = hidden[:, 0, :]
    lg = cls32 @ fc_w + fc_b
    ref_f32 = lg / jnp.maximum(jnp.linalg.norm(lg, axis=1, keepdims=True), 1e-12)
    assert jnp.allclose(out, ref_f32, atol=2e-2)

    print("KERNEL_OK")
</pallas_src>

<mosaic_0001>
module attributes {stable_mosaic.version = 11 : i64} {
  func.func @_supcon_head_kernel(%arg0: i32, %arg1: memref<8x64xbf16, #tpu.memory_space<vmem>>, %arg2: memref<64x128xbf16, #tpu.memory_space<vmem>>, %arg3: memref<1x128xf32, #tpu.memory_space<vmem>>, %arg4: memref<8x128xf32, #tpu.memory_space<vmem>>) attributes {dimension_semantics = [#tpu.dimension_semantics<parallel>], iteration_bounds = array<i64: 1>, scalar_prefetch = 0 : i64, scratch_operands = 0 : i64, tpu.core_type = #tpu.core_type<tc>, window_params = [{transform_indices = @transform_0, window_bounds = array<i64: 8, 64>}, {pipeline_mode = #tpu.pipeline_mode<synchronous>, transform_indices = @transform_1, window_bounds = array<i64: 64, 128>}, {pipeline_mode = #tpu.pipeline_mode<synchronous>, transform_indices = @transform_2, window_bounds = array<i64: 1, 128>}, {transform_indices = @transform_3, window_bounds = array<i64: 8, 128>}]} {
    %c0 = arith.constant 0 : index
    %c0_0 = arith.constant 0 : index
    %0 = vector.load %arg1[%c0, %c0_0] : memref<8x64xbf16, #tpu.memory_space<vmem>>, vector<8x64xbf16>
    %c0_1 = arith.constant 0 : index
    %c0_2 = arith.constant 0 : index
    %1 = vector.load %arg2[%c0_1, %c0_2] : memref<64x128xbf16, #tpu.memory_space<vmem>>, vector<64x128xbf16>
    %cst = arith.constant dense<0.000000e+00> : vector<8x128xf32>
    %2 = tpu.matmul %0, %1, %cst {dimension_numbers = #tpu.dot_dimension_numbers<[1], [0], [0], [1], [0, 0, 1, 1], [], []>} : vector<8x64xbf16>, vector<64x128xbf16>, vector<8x128xf32> -> vector<8x128xf32>
    %c0_3 = arith.constant 0 : index
    %c0_4 = arith.constant 0 : index
    %3 = vector.load %arg3[%c0_3, %c0_4] : memref<1x128xf32, #tpu.memory_space<vmem>>, vector<1x128xf32>
    %4 = vector.broadcast %3 : vector<1x128xf32> to vector<8x128xf32>
    %5 = arith.addf %2, %4 : vector<8x128xf32>
    %6 = arith.mulf %5, %5 : vector<8x128xf32>
    %cst_5 = arith.constant dense<0.000000e+00> : vector<8xf32>
    %7 = vector.multi_reduction <add>, %6, %cst_5 [1] : vector<8x128xf32> to vector<8xf32>
    %8 = vector.shape_cast %7 : vector<8xf32> to vector<8x1xf32>
    %cst_6 = arith.constant 1.000000e-24 : f32
    %9 = vector.broadcast %cst_6 : f32 to vector<8x1xf32>
    %10 = arith.maximumf %8, %9 : vector<8x1xf32>
    %11 = math.rsqrt %10 : vector<8x1xf32>
    %12 = vector.broadcast %11 : vector<8x1xf32> to vector<8x128xf32>
    %13 = arith.mulf %5, %12 : vector<8x128xf32>
    %c0_7 = arith.constant 0 : index
    %c0_8 = arith.constant 0 : index
    %14 = vector.load %arg4[%c0_7, %c0_8] : memref<8x128xf32, #tpu.memory_space<vmem>>, vector<8x128xf32>
    tpu.vector_store %arg4[%c0_7, %c0_8], %13 {strides = array<i32>} : memref<8x128xf32, #tpu.memory_space<vmem>>, vector<8x128xf32>,
    return
  }
  func.func @transform_0(%arg0: i32) -> (i32, i32) {
    %c0_i32 = arith.constant 0 : i32
    %c0_i32_0 = arith.constant 0 : i32
    return %arg0, %c0_i32 : i32, i32
  }
  func.func @transform_1(%arg0: i32) -> (i32, i32) {
    %c0_i32 = arith.constant 0 : i32
    %c0_i32_0 = arith.constant 0 : i32
    %c0_i32_1 = arith.constant 0 : i32
    return %c0_i32, %c0_i32_0 : i32, i32
  }
  func.func @transform_2(%arg0: i32) -> (i32, i32) {
    %c0_i32 = arith.constant 0 : i32
    %c0_i32_0 = arith.constant 0 : i32
    %c0_i32_1 = arith.constant 0 : i32
    return %c0_i32, %c0_i32_0 : i32, i32
  }
  func.func @transform_3(%arg0: i32) -> (i32, i32) {
    %c0_i32 = arith.constant 0 : i32
    %c0_i32_0 = arith.constant 0 : i32
    return %arg0, %c0_i32 : i32, i32
  }
}

</mosaic_0001>

<llo_original>
// kernel: tpu_custom_call.1
$region0: #{tpu_custom_call.1}
  #allocation0 [shape = 'u32[]', space=smem, size = 0x4, offset = 0x4, fixed_abs, tag = 'smem constant byte address 0x4 - core index']
  #allocation1 [shape = 'u32[144,128]{1,0:T(1,128)}', space=vmem, size = 0x12000, scoped, tag = 'internal scratch']
  %s0 = inlined_call_operand.hbm [shape: bf16[8,64], index: 0, kind: input, shape index: {}]
  %s1 = inlined_call_operand.hbm [shape: bf16[64,128], index: 1, kind: input, shape index: {}]
  %s2 = inlined_call_operand.vmem [shape: f32[1,128], index: 2, kind: input, shape index: {}]
  %s3 = inlined_call_operand.hbm [shape: f32[8,128], index: 3, kind: output, shape index: {}]
  %s4 = sld [smem:[#allocation0]]
  $region30: #{tpu_custom_call.1} parent=0
    _
  %s6 = ssub.s32 1, %s4
  %s7 = scalar_select 0, %s6, %s4
  $region1: #{tpu_custom_call.1} parent=0
    #allocation2 [shape = 'u8[2048]{0}', space=vmem, size = 0x800, scoped, tag = 'input window, operand 0, single buffered']
    #allocation3 [shape = 's32[1]{0}', space=sflag, size = 0x4, scoped, tag = 'scoped memory for tpu_custom_call.1']
    #allocation4 [shape = 's32[1]{0}', space=sflag, size = 0x4, scoped, tag = 'scoped memory for tpu_custom_call.1']
    #allocation5 [shape = 'u8[16384]{0}', space=vmem, size = 0x4000, scoped, tag = 'input window, operand 1, single buffered']
    #allocation6 [shape = 's32[1]{0}', space=sflag, size = 0x4, scoped, tag = 'scoped memory for tpu_custom_call.1']
    #allocation7 [shape = 'u8[4096]{0}', space=vmem, size = 0x1000, scoped, tag = 'output window, operand 0, single buffered']
    %8 = vsyncpa [#allocation3], 0
    %9 = vsyncpa [#allocation6], 0
    %10 = vsyncpa [#allocation4], 0
    // Predicated region
    $region2: #{tpu_custom_call.1} parent=1 // pred_check
      _
    $region3: #{tpu_custom_call.1} parent=1 // pred_check_branch
      %12 = sbr.rel (0) target = $region5
    $region4: #{tpu_custom_call.1} parent=1 // pred_region
      %s14 = ssub.s32 64, 64
      %15 = vsyncadd [#allocation3], %s14
      %s17 = sshll.u32 [#allocation2], 4
      %s18 = int_to_ptr.vmem [resolvable:$true] %s17
      %20 = dma.hbm_to_vmem [thread:$0]  %s0, 64, %s18, [#allocation3]
    $region5: #{tpu_custom_call.1} parent=1 // pred_fallthru
      _
    // Predicated region
    $region6: #{tpu_custom_call.1} parent=1 // pred_check
      _
    $region7: #{tpu_custom_call.1} parent=1 // pred_check_branch
      %22 = sbr.rel (0) target = $region9
    $region8: #{tpu_custom_call.1} parent=1 // pred_region
      %s24 = ssub.s32 512, 512
      %25 = vsyncadd [#allocation6], %s24
      %s26 = sshll.u32 [#allocation5], 4
      %s27 = int_to_ptr.vmem [resolvable:$true] %s26
      %32 = dma.hbm_to_vmem [thread:$0]  %s1, 512, %s27, [#allocation6], 64, 64, 4
    $region9: #{tpu_custom_call.1} parent=1 // pred_fallthru
      _
    // Predicated region
    $region10: #{tpu_custom_call.1} parent=1 // pred_check
      _
    $region11: #{tpu_custom_call.1} parent=1 // pred_check_branch
      %34 = sbr.rel (0) target = $region13
    $region12: #{tpu_custom_call.1} parent=1 // pred_region
      _
    $region13: #{tpu_custom_call.1} parent=1 // pred_fallthru
      _
    // Predicated region
    $region14: #{tpu_custom_call.1} parent=1 // pred_check
      _
    $region15: #{tpu_custom_call.1} parent=1 // pred_check_branch
      %36 = sbr.rel (0) target = $region17
    $region16: #{tpu_custom_call.1} parent=1 // pred_region
      %37 = dma.done [#allocation3], 64
    $region17: #{tpu_custom_call.1} parent=1 // pred_fallthru
      _
    // Predicated region
    $region18: #{tpu_custom_call.1} parent=1 // pred_check
      _
    $region19: #{tpu_custom_call.1} parent=1 // pred_check_branch
      %39 = sbr.rel (0) target = $region21
    $region20: #{tpu_custom_call.1} parent=1 // pred_region
      %40 = dma.done [#allocation6], 512
    $region21: #{tpu_custom_call.1} parent=1 // pred_fallthru
      _
    %v42 = vld [vmem:[#allocation2] sm:$0xf]
    %v43 = vld [vmem:[#allocation5] sm:$0xf]
    %v44 = vld [vmem:[#allocation5 + $0x4] sm:$0xf]
    %v45 = vld [vmem:[#allocation5 + $0x8] sm:$0xf]
    %v46 = vld [vmem:[#allocation5 + $0xc] sm:$0xf]
    %v47 = vld [vmem:[#allocation5 + $0x10] sm:$0xf]
    %v48 = vld [vmem:[#allocation5 + $0x14] sm:$0xf]
    %v49 = vld [vmem:[#allocation5 + $0x18] sm:$0xf]
    %v50 = vld [vmem:[#allocation5 + $0x1c] sm:$0xf]
    %v51 = vld [vmem:[%s2] sm:$0x1]
    %v53 = vlaneseq
    %v54 = vshrl.u32 %v53, 7
    %v55 = vsub.s32 0, %v54
    %v56 = vrot.slane %v51, %v55
    %v66 = vunpack.c.l.b16 %v43
    %v67 = vunpack.c.l.b16 %v44
    %v68 = vunpack.c.l.b16 %v45
    %v69 = vunpack.c.l.b16 %v46
    %v70 = vunpack.c.l.b16 %v47
    %v71 = vunpack.c.l.b16 %v48
    %v72 = vunpack.c.l.b16 %v49
    %v73 = vunpack.c.l.b16 %v50
    %v74 = vpack.c.b16 %v67, %v66
    %v75 = vpack.c.b16 %v69, %v68
    %v76 = vpack.c.b16 %v71, %v70
    %v77 = vpack.c.b16 %v73, %v72
    %vm82 = vcmask 523264
    %v84 = vsel %vm82, %v42, 0
    %86 = vmatprep.subr.bf16.mxu0 0
    %87 = vmatpush1.bf16.msra.mxu0 0
    %88 = vmatprep.subr.bf16.mxu0 0
    %89 = vmatpush1.bf16.msra.mxu0 0
    %90 = vmatprep.subr.bf16.mxu0 0
    %91 = vmatpush1.bf16.msra.mxu0 0
    %92 = vmatprep.subr.bf16.mxu0 0
    %93 = vmatpush1.bf16.msra.mxu0 0
    %94 = vmatprep.subr.bf16.mxu0 0
    %95 = vmatpush1.bf16.msra.mxu0 %v77
    %96 = vmatprep.subr.bf16.mxu0 0
    %97 = vmatpush1.bf16.msra.mxu0 %v76
    %98 = vmatprep.subr.bf16.mxu0 0
    %99 = vmatpush1.bf16.msra.mxu0 %v75
    %100 = vmatprep.subr.bf16.mxu0 0
    %101 = vmatpush1.bf16.msra.mxu0 %v74
    %102 = vmatprep.subr.bf16.mxu0 0
    %103 = vmatpush2.bf16.msra.mxu0 0
    %104 = vmatprep.subr.bf16.mxu0 0
    %105 = vmatpush2.bf16.msra.mxu0 0
    %106 = vmatprep.subr.bf16.mxu0 0
    %107 = vmatpush2.bf16.msra.mxu0 0
    %108 = vmatprep.subr.bf16.mxu0 0
    %109 = vmatpush2.bf16.msra.mxu0 0
    %110 = vmatprep.subr.bf16.mxu0 0
    %111 = vmatpush2.bf16.msra.mxu0 0
    %112 = vmatprep.subr.bf16.mxu0 0
    %113 = vmatpush2.bf16.msra.mxu0 0
    %114 = vmatprep.subr.bf16.mxu0 0
    %115 = vmatpush2.bf16.msra.mxu0 0
    %116 = vmatprep.subr.bf16.mxu0 0
    %117 = vmatpush2.bf16.msra.mxu0 0
    %118 = vmatprep.mubr.bf16.mxu0 0
    %119 = vmatmul.mubr.bf16.gmra.mxu0 %v84
    %v120 = vpop.f32.mrf.mxu0
    %v121 = vadd.f32 %v56, %v120
    %v122 = vpop.f32.mrf.mxu0
    %v123 = vpop.f32.mrf.mxu0
    %v124 = vpop.f32.mrf.mxu0
    %125 = vdwg.mxu0
    %v126 = vmul.f32 %v121, %v121
    %127 = vadd.xlane.f32.xlu0 %v126
    %v128 = vpop.xlane.xlu0 %127
    %v129 = vmax.f32 %v128, 1e-24
    %v130 = vrsqrt.pop %v129
    %v131 = vmul.f32 %v121, %v130
    %132 = vst [vmem:[#allocation7] sm:$0xff] %v131
    // Predicated region
    $region22: #{tpu_custom_call.1} parent=1 // pred_check
      _
    $region23: #{tpu_custom_call.1} parent=1 // pred_check_branch
      %134 = sbr.rel (0) target = $region25
    $region24: #{tpu_custom_call.1} parent=1 // pred_region
      %s136 = ssub.s32 128, 128
      %137 = vsyncadd [#allocation4], %s136
      %s139 = sshll.u32 [#allocation7], 4
      %s140 = int_to_ptr.vmem [resolvable:$true] %s139
      %142 = dma.vmem_to_hbm [thread:$0]  %s140, 128, %s3, [#allocation4]
    $region25: #{tpu_custom_call.1} parent=1 // pred_fallthru
      _
    // Predicated region
    $region26: #{tpu_custom_call.1} parent=1 // pred_check
      _
    $region27: #{tpu_custom_call.1} parent=1 // pred_check_branch
      %144 = sbr.rel (0) target = $region29
    $region28: #{tpu_custom_call.1} parent=1 // pred_region
      %145 = dma.done [#allocation4], 128
    $region29: #{tpu_custom_call.1} parent=1 // pred_fallthru
      _
    %146 = vsyncpa [#allocation3], 1
    %147 = vsyncpa [#allocation6], 1
    %148 = vsyncpa [#allocation4], 1

</llo_original>
